<compile_context>
chip_gen: v6e
topology: v6e:2x2x1
jax: 0.10.0
libtpu: 0.0.40
codegen_flags: <defaults>
</compile_context>

<pallas_src>
import math

import jax
import jax.numpy as jnp
from jax import lax
from jax.experimental import pallas as pl
from jax.experimental.pallas import tpu as pltpu


def _pick_tile_n(n, max_tile=512):
    """Pick an n-tile that satisfies the (…,128) BlockSpec rule and divides n."""
    if n <= max_tile:
        return n
    if n % 128 == 0:
        t = max_tile - (max_tile % 128)
        while t >= 128:
            if n % t == 0:
                return t
            t -= 128
    # TODO(synk): pad n up to a multiple of 128 for odd production sizes
    return n


def _mxu(w_ref, x_f32):
    """MXU matmul: cast the activation to the (possibly bf16) weight dtype,
    accumulate in f32."""
    w = w_ref[...]
    return jnp.dot(w, x_f32.astype(w.dtype), preferred_element_type=jnp.float32)


def _make_fp_kernel(num_layers, has_interp, has_skip):
    """Build the fused FP kernel for one (batch, n-tile) grid step."""

    def kernel(*refs):
        pos = 0
        if has_interp:
            u_ref, k_ref, kf_ref = refs[0], refs[1], refs[2]   # (3,tn),(m,3),(C2,m)
            pos = 3
        else:
            f0_ref = refs[0]                                   # (C2, tn)
            pos = 1
        if has_skip:
            skip_ref = refs[pos]                               # (C1, tn)
            pos += 1
        params = refs[pos:-1]
        out_ref = refs[-1]                                     # (C_last, tn)

        if has_interp:
            u = u_ref[...].astype(jnp.float32)                 # (3, tn)
            k = k_ref[...].astype(jnp.float32)                 # (m, 3)
            m = k.shape[0]
            tn = u.shape[1]

            # Pairwise squared distances in (m, tn): MXU cross term + rank-1 adds.
            cross = jnp.dot(k, u, preferred_element_type=jnp.float32)   # (m, tn)
            k_sq = jnp.sum(k * k, axis=1, keepdims=True)                # (m, 1)
            u_sq = jnp.sum(u * u, axis=0, keepdims=True)                # (1, tn)
            d2 = jnp.maximum(k_sq + u_sq - 2.0 * cross, 0.0)            # (m, tn)

            # Three argmin passes (lowest-index tie-break, matches top_k /
            # the CUDA three_nn), building a sparse (m, tn) weight matrix.
            iota_m = lax.broadcasted_iota(jnp.int32, (m, tn), 0)
            big = jnp.float32(1e30)
            w_accum = jnp.zeros((m, tn), jnp.float32)
            norm = jnp.zeros((1, tn), jnp.float32)
            d_work = d2
            for _ in range(3):
                minval = jnp.min(d_work, axis=0, keepdims=True)         # (1, tn)
                idx_cand = jnp.where(d_work == minval, iota_m, m)
                minidx = jnp.min(idx_cand, axis=0, keepdims=True)       # (1, tn)
                onehot = (iota_m == minidx).astype(jnp.float32)         # (m, tn)
                recip = 1.0 / (minval + 1e-8)                           # (1, tn)
                w_accum = w_accum + onehot * recip
                norm = norm + recip
                d_work = jnp.where(onehot > 0, big, d_work)

            # Interpolate with one MXU matmul (no transpose needed in this
            # orientation); normalize AFTER the matmul with a (1, tn) factor.
            kf = kf_ref[...].astype(jnp.float32)                        # (C2, m)
            feats0 = jnp.dot(kf, w_accum, preferred_element_type=jnp.float32)
            feats0 = feats0 * (1.0 / norm)                              # (C2, tn)
        else:
            feats0 = f0_ref[...].astype(jnp.float32)                    # (C2, tn)

        # --- shared MLP, concat fused via split layer-0 weight --------------
        p = 0
        if has_skip:
            w0a_ref, w0b_ref, b0_ref = params[p], params[p + 1], params[p + 2]
            p += 3
            y = _mxu(w0a_ref, feats0) + _mxu(w0b_ref, skip_ref[...].astype(jnp.float32))
        else:
            w0_ref, b0_ref = params[p], params[p + 1]
            p += 2
            y = _mxu(w0_ref, feats0)
        y = jnp.maximum(y + b0_ref[...], 0.0)

        for _ in range(1, num_layers):
            wl_ref, bl_ref = params[p], params[p + 1]
            p += 2
            y = jnp.maximum(_mxu(wl_ref, y) + bl_ref[...], 0.0)

        out_ref[...] = y.astype(out_ref.dtype)

    return kernel


class FPPallas:
    """PointNet++ FP module with folded BN, fully fused Pallas forward pass."""

    def __init__(self, mlp_param, key, mxu_dtype=jnp.float32):
        # mxu_dtype=jnp.bfloat16 halves weight/activation MXU traffic on
        # v6e/v7x (f32 accumulation preserved); keep f32 here for exact checks.
        self.mlp_param = list(mlp_param)
        self.mxu_dtype = mxu_dtype
        self.layers = []
        for i in range(1, len(mlp_param)):
            c_in, c_out = mlp_param[i - 1], mlp_param[i]
            key, k_w, k_g, k_b = jax.random.split(key, 4)
            # Conv2d(1x1) weight, bias-free (a norm layer follows in ConvModule).
            w = jax.random.normal(k_w, (c_out, c_in), jnp.float32) / math.sqrt(c_in)
            gamma = 1.0 + 0.1 * jax.random.normal(k_g, (c_out, 1), jnp.float32)
            beta = 0.1 * jax.random.normal(k_b, (c_out, 1), jnp.float32)
            running_mean = jnp.zeros((c_out, 1), jnp.float32)
            running_var = jnp.ones((c_out, 1), jnp.float32)
            eps = 1e-5
            scale = gamma / jnp.sqrt(running_var + eps)       # BN (eval) folded
            shift = beta - running_mean * scale
            w_folded = scale * w                              # fold BN scale into W
            self.layers.append((w_folded, shift))

    def __call__(self, unknown, known, unknow_feats, known_feats, tile_n=512):
        B, n, _ = unknown.shape
        has_interp = known is not None
        has_skip = unknow_feats is not None
        C2 = known_feats.shape[1]
        tn = _pick_tile_n(n, tile_n)
        grid = (B, n // tn)

        inputs = []
        in_specs = []
        if has_interp:
            m = known.shape[1]
            unknown_t = jnp.transpose(unknown, (0, 2, 1))     # (B, 3, n) lane-dense
            inputs += [unknown_t, known, known_feats]
            in_specs += [
                pl.BlockSpec((None, 3, tn), lambda b, i: (b, 0, i)),
                pl.BlockSpec((None, m, 3), lambda b, i: (b, 0, 0)),
                pl.BlockSpec((None, C2, m), lambda b, i: (b, 0, 0)),
            ]
            # TODO(synk): for very large m, stream m in chunks with a running
            # top-3 instead of a full (m, tn) distance tile.
        else:
            feats0 = jnp.broadcast_to(known_feats, (B, C2, n))
            inputs += [feats0]
            in_specs += [pl.BlockSpec((None, C2, tn), lambda b, i: (b, 0, i))]

        if has_skip:
            C1 = unknow_feats.shape[1]
            inputs += [unknow_feats]
            in_specs += [pl.BlockSpec((None, C1, tn), lambda b, i: (b, 0, i))]

        num_layers = len(self.layers)
        for li, (w, shift) in enumerate(self.layers):
            if li == 0 and has_skip:
                w_a = w[:, :C2].astype(self.mxu_dtype)        # acts on interpolated
                w_b = w[:, C2:].astype(self.mxu_dtype)        # acts on skip features
                inputs += [w_a, w_b, shift]
                in_specs += [
                    pl.BlockSpec(w_a.shape, lambda b, i: (0, 0)),
                    pl.BlockSpec(w_b.shape, lambda b, i: (0, 0)),
                    pl.BlockSpec(shift.shape, lambda b, i: (0, 0)),
                ]
            else:
                w_c = w.astype(self.mxu_dtype)
                inputs += [w_c, shift]
                in_specs += [
                    pl.BlockSpec(w_c.shape, lambda b, i: (0, 0)),
                    pl.BlockSpec(shift.shape, lambda b, i: (0, 0)),
                ]

        c_last = self.mlp_param[-1]
        kernel = _make_fp_kernel(num_layers, has_interp, has_skip)
        return pl.pallas_call(
            kernel,
            out_shape=jax.ShapeDtypeStruct((B, c_last, n), known_feats.dtype),
            grid=grid,
            in_specs=in_specs,
            out_specs=pl.BlockSpec((None, c_last, tn), lambda b, i: (b, 0, i)),
            compiler_params=pltpu.CompilerParams(
                dimension_semantics=("parallel", "parallel"),
                vmem_limit_bytes=48 * 1024 * 1024,   # fits v7x's 64 MiB with headroom
            ),
        )(*inputs)


# ---------------------------------------------------------------------------
# Pure-JAX reference (spec semantics: direct squared distances + top_k).
# ---------------------------------------------------------------------------
def fp_reference(unknown, known, unknow_feats, known_feats, layers):
    d2 = jnp.sum((unknown[:, :, None, :] - known[:, None, :, :]) ** 2, axis=-1)  # (B,n,m)
    neg_d, idx = lax.top_k(-d2, 3)
    dist = -neg_d
    dist_recip = 1.0 / (dist + 1e-8)
    norm = jnp.sum(dist_recip, axis=2, keepdims=True)
    weight = dist_recip / norm                                                    # (B,n,3)
    gathered = jnp.take_along_axis(
        known_feats[:, :, None, :], idx[:, None, :, :], axis=3)                  # (B,C2,n,3)
    interpolated = jnp.sum(gathered * weight[:, None, :, :], axis=3)              # (B,C2,n)
    x = jnp.concatenate([interpolated, unknow_feats], axis=1)
    for w, shift in layers:
        x = jnp.maximum(jnp.einsum("oc,bcn->bon", w, x) + shift[None], 0.0)
    return x


if __name__ == "__main__":
    key = jax.random.PRNGKey(0)
    B, n, m = 2, 16, 8          # n unknown (target) points, m known (source) points
    C_unknown, C_known = 4, 6   # feature channels at unknown / known points
    mlp_param = [C_unknown + C_known, 32, 16]

    key, k1, k2, k3, k4, k_params = jax.random.split(key, 6)
    unknown = jax.random.normal(k1, (B, n, 3), jnp.float32)
    known = jax.random.normal(k2, (B, m, 3), jnp.float32)
    unknow_feats = jax.random.normal(k3, (B, C_unknown, n), jnp.float32)
    known_feats = jax.random.normal(k4, (B, C_known, m), jnp.float32)

    fp = FPPallas(mlp_param, k_params)
    out = jax.block_until_ready(fp(unknown, known, unknow_feats, known_feats))

    ref = fp_reference(unknown, known, unknow_feats, known_feats, fp.layers)
    assert out.shape == (B, mlp_param[-1], n), out.shape
    max_err = float(jnp.max(jnp.abs(out - ref)))
    assert jnp.allclose(out, ref, rtol=1e-4, atol=1e-4), max_err

    print("KERNEL_OK")
</pallas_src>

<mosaic_0001>
module attributes {stable_mosaic.version = 11 : i64} {
  func.func @kernel(%arg0: i32, %arg1: i32, %arg2: memref<1x3x16xf32, #tpu.memory_space<vmem>>, %arg3: memref<1x8x3xf32, #tpu.memory_space<vmem>>, %arg4: memref<1x6x8xf32, #tpu.memory_space<vmem>>, %arg5: memref<1x4x16xf32, #tpu.memory_space<vmem>>, %arg6: memref<32x6xf32, #tpu.memory_space<vmem>>, %arg7: memref<32x4xf32, #tpu.memory_space<vmem>>, %arg8: memref<32x1xf32, #tpu.memory_space<vmem>>, %arg9: memref<16x32xf32, #tpu.memory_space<vmem>>, %arg10: memref<16x1xf32, #tpu.memory_space<vmem>>, %arg11: memref<1x16x16xf32, #tpu.memory_space<vmem>>) attributes {dimension_semantics = [#tpu.dimension_semantics<parallel>, #tpu.dimension_semantics<parallel>], iteration_bounds = array<i64: 2, 1>, scalar_prefetch = 0 : i64, scratch_operands = 0 : i64, tpu.core_type = #tpu.core_type<tc>, window_params = [{transform_indices = @transform_0, window_bounds = array<i64: 1, 3, 16>}, {transform_indices = @transform_1, window_bounds = array<i64: 1, 8, 3>}, {transform_indices = @transform_2, window_bounds = array<i64: 1, 6, 8>}, {transform_indices = @transform_3, window_bounds = array<i64: 1, 4, 16>}, {pipeline_mode = #tpu.pipeline_mode<synchronous>, transform_indices = @transform_4, window_bounds = array<i64: 32, 6>}, {pipeline_mode = #tpu.pipeline_mode<synchronous>, transform_indices = @transform_5, window_bounds = array<i64: 32, 4>}, {pipeline_mode = #tpu.pipeline_mode<synchronous>, transform_indices = @transform_6, window_bounds = array<i64: 32, 1>}, {pipeline_mode = #tpu.pipeline_mode<synchronous>, transform_indices = @transform_7, window_bounds = array<i64: 16, 32>}, {pipeline_mode = #tpu.pipeline_mode<synchronous>, transform_indices = @transform_8, window_bounds = array<i64: 16, 1>}, {transform_indices = @transform_9, window_bounds = array<i64: 1, 16, 16>}]} {
    %c0 = arith.constant 0 : index
    %c0_0 = arith.constant 0 : index
    %c0_1 = arith.constant 0 : index
    %0 = vector.load %arg2[%c0, %c0_0, %c0_1] : memref<1x3x16xf32, #tpu.memory_space<vmem>>, vector<1x3x16xf32>
    %1 = vector.shape_cast %0 : vector<1x3x16xf32> to vector<3x16xf32>
    %c0_2 = arith.constant 0 : index
    %c0_3 = arith.constant 0 : index
    %c0_4 = arith.constant 0 : index
    %2 = vector.load %arg3[%c0_2, %c0_3, %c0_4] : memref<1x8x3xf32, #tpu.memory_space<vmem>>, vector<1x8x3xf32>
    %3 = vector.shape_cast %2 : vector<1x8x3xf32> to vector<8x3xf32>
    %cst = arith.constant dense<0.000000e+00> : vector<8x16xf32>
    %4 = tpu.matmul %3, %1, %cst {dimension_numbers = #tpu.dot_dimension_numbers<[1], [0], [0], [1], [0, 0, 1, 1], [], []>} : vector<8x3xf32>, vector<3x16xf32>, vector<8x16xf32> -> vector<8x16xf32>
    %5 = arith.mulf %3, %3 : vector<8x3xf32>
    %cst_5 = arith.constant dense<0.000000e+00> : vector<8xf32>
    %6 = vector.multi_reduction <add>, %5, %cst_5 [1] : vector<8x3xf32> to vector<8xf32>
    %7 = vector.shape_cast %6 : vector<8xf32> to vector<8x1xf32>
    %8 = arith.mulf %1, %1 : vector<3x16xf32>
    %cst_6 = arith.constant dense<0.000000e+00> : vector<16xf32>
    %9 = vector.multi_reduction <add>, %8, %cst_6 [0] : vector<3x16xf32> to vector<16xf32>
    %10 = vector.shape_cast %9 : vector<16xf32> to vector<1x16xf32>
    %11 = vector.broadcast %7 : vector<8x1xf32> to vector<8x16xf32>
    %12 = vector.broadcast %10 : vector<1x16xf32> to vector<8x16xf32>
    %13 = arith.addf %11, %12 : vector<8x16xf32>
    %cst_7 = arith.constant 2.000000e+00 : f32
    %14 = vector.broadcast %cst_7 : f32 to vector<8x16xf32>
    %15 = arith.mulf %14, %4 : vector<8x16xf32>
    %16 = arith.subf %13, %15 : vector<8x16xf32>
    %cst_8 = arith.constant 0.000000e+00 : f32
    %17 = vector.broadcast %cst_8 : f32 to vector<8x16xf32>
    %18 = arith.maximumf %16, %17 : vector<8x16xf32>
    %19 = tpu.iota {dimensions = array<i32: 0>} : vector<8x16xi32>
    %cst_9 = arith.constant 0.000000e+00 : f32
    %20 = vector.broadcast %cst_9 : f32 to vector<8x16xf32>
    %cst_10 = arith.constant 0.000000e+00 : f32
    %21 = vector.broadcast %cst_10 : f32 to vector<1x16xf32>
    %cst_11 = arith.constant dense<0x7F800000> : vector<16xf32>
    %22 = vector.multi_reduction <minimumf>, %18, %cst_11 [0] : vector<8x16xf32> to vector<16xf32>
    %23 = vector.shape_cast %22 : vector<16xf32> to vector<1x16xf32>
    %24 = vector.broadcast %23 : vector<1x16xf32> to vector<8x16xf32>
    %25 = arith.cmpf oeq, %18, %24 : vector<8x16xf32>
    %c8_i32 = arith.constant 8 : i32
    %26 = vector.broadcast %c8_i32 : i32 to vector<8x16xi32>
    %27 = arith.select %25, %19, %26 : vector<8x16xi1>, vector<8x16xi32>
    %cst_12 = arith.constant dense<2147483647> : vector<16xi32>
    %28 = vector.multi_reduction <minsi>, %27, %cst_12 [0] : vector<8x16xi32> to vector<16xi32>
    %29 = vector.shape_cast %28 : vector<16xi32> to vector<1x16xi32>
    %30 = vector.broadcast %29 : vector<1x16xi32> to vector<8x16xi32>
    %31 = arith.cmpi eq, %19, %30 : vector<8x16xi32>
    %32 = arith.extui %31 : vector<8x16xi1> to vector<8x16xi32>
    %33 = arith.sitofp %32 : vector<8x16xi32> to vector<8x16xf32>
    %cst_13 = arith.constant 9.99999993E-9 : f32
    %34 = vector.broadcast %cst_13 : f32 to vector<1x16xf32>
    %35 = arith.addf %23, %34 : vector<1x16xf32>
    %cst_14 = arith.constant 1.000000e+00 : f32
    %36 = vector.broadcast %cst_14 : f32 to vector<1x16xf32>
    %37 = arith.divf %36, %35 : vector<1x16xf32>
    %38 = vector.broadcast %37 : vector<1x16xf32> to vector<8x16xf32>
    %39 = arith.mulf %33, %38 : vector<8x16xf32>
    %40 = arith.addf %20, %39 : vector<8x16xf32>
    %41 = arith.addf %21, %37 : vector<1x16xf32>
    %cst_15 = arith.constant 0.000000e+00 : f32
    %42 = vector.broadcast %cst_15 : f32 to vector<8x16xf32>
    %43 = arith.cmpf ogt, %33, %42 : vector<8x16xf32>
    %cst_16 = arith.constant 1.000000e+30 : f32
    %44 = vector.broadcast %cst_16 : f32 to vector<8x16xf32>
    %45 = arith.select %43, %44, %18 : vector<8x16xi1>, vector<8x16xf32>
    %cst_17 = arith.constant dense<0x7F800000> : vector<16xf32>
    %46 = vector.multi_reduction <minimumf>, %45, %cst_17 [0] : vector<8x16xf32> to vector<16xf32>
    %47 = vector.shape_cast %46 : vector<16xf32> to vector<1x16xf32>
    %48 = vector.broadcast %47 : vector<1x16xf32> to vector<8x16xf32>
    %49 = arith.cmpf oeq, %45, %48 : vector<8x16xf32>
    %c8_i32_18 = arith.constant 8 : i32
    %50 = vector.broadcast %c8_i32_18 : i32 to vector<8x16xi32>
    %51 = arith.select %49, %19, %50 : vector<8x16xi1>, vector<8x16xi32>
    %cst_19 = arith.constant dense<2147483647> : vector<16xi32>
    %52 = vector.multi_reduction <minsi>, %51, %cst_19 [0] : vector<8x16xi32> to vector<16xi32>
    %53 = vector.shape_cast %52 : vector<16xi32> to vector<1x16xi32>
    %54 = vector.broadcast %53 : vector<1x16xi32> to vector<8x16xi32>
    %55 = arith.cmpi eq, %19, %54 : vector<8x16xi32>
    %56 = arith.extui %55 : vector<8x16xi1> to vector<8x16xi32>
    %57 = arith.sitofp %56 : vector<8x16xi32> to vector<8x16xf32>
    %cst_20 = arith.constant 9.99999993E-9 : f32
    %58 = vector.broadcast %cst_20 : f32 to vector<1x16xf32>
    %59 = arith.addf %47, %58 : vector<1x16xf32>
    %cst_21 = arith.constant 1.000000e+00 : f32
    %60 = vector.broadcast %cst_21 : f32 to vector<1x16xf32>
    %61 = arith.divf %60, %59 : vector<1x16xf32>
    %62 = vector.broadcast %61 : vector<1x16xf32> to vector<8x16xf32>
    %63 = arith.mulf %57, %62 : vector<8x16xf32>
    %64 = arith.addf %40, %63 : vector<8x16xf32>
    %65 = arith.addf %41, %61 : vector<1x16xf32>
    %cst_22 = arith.constant 0.000000e+00 : f32
    %66 = vector.broadcast %cst_22 : f32 to vector<8x16xf32>
    %67 = arith.cmpf ogt, %57, %66 : vector<8x16xf32>
    %cst_23 = arith.constant 1.000000e+30 : f32
    %68 = vector.broadcast %cst_23 : f32 to vector<8x16xf32>
    %69 = arith.select %67, %68, %45 : vector<8x16xi1>, vector<8x16xf32>
    %cst_24 = arith.constant dense<0x7F800000> : vector<16xf32>
    %70 = vector.multi_reduction <minimumf>, %69, %cst_24 [0] : vector<8x16xf32> to vector<16xf32>
    %71 = vector.shape_cast %70 : vector<16xf32> to vector<1x16xf32>
    %72 = vector.broadcast %71 : vector<1x16xf32> to vector<8x16xf32>
    %73 = arith.cmpf oeq, %69, %72 : vector<8x16xf32>
    %c8_i32_25 = arith.constant 8 : i32
    %74 = vector.broadcast %c8_i32_25 : i32 to vector<8x16xi32>
    %75 = arith.select %73, %19, %74 : vector<8x16xi1>, vector<8x16xi32>
    %cst_26 = arith.constant dense<2147483647> : vector<16xi32>
    %76 = vector.multi_reduction <minsi>, %75, %cst_26 [0] : vector<8x16xi32> to vector<16xi32>
    %77 = vector.shape_cast %76 : vector<16xi32> to vector<1x16xi32>
    %78 = vector.broadcast %77 : vector<1x16xi32> to vector<8x16xi32>
    %79 = arith.cmpi eq, %19, %78 : vector<8x16xi32>
    %80 = arith.extui %79 : vector<8x16xi1> to vector<8x16xi32>
    %81 = arith.sitofp %80 : vector<8x16xi32> to vector<8x16xf32>
    %cst_27 = arith.constant 9.99999993E-9 : f32
    %82 = vector.broadcast %cst_27 : f32 to vector<1x16xf32>
    %83 = arith.addf %71, %82 : vector<1x16xf32>
    %cst_28 = arith.constant 1.000000e+00 : f32
    %84 = vector.broadcast %cst_28 : f32 to vector<1x16xf32>
    %85 = arith.divf %84, %83 : vector<1x16xf32>
    %86 = vector.broadcast %85 : vector<1x16xf32> to vector<8x16xf32>
    %87 = arith.mulf %81, %86 : vector<8x16xf32>
    %88 = arith.addf %64, %87 : vector<8x16xf32>
    %89 = arith.addf %65, %85 : vector<1x16xf32>
    %c0_29 = arith.constant 0 : index
    %c0_30 = arith.constant 0 : index
    %c0_31 = arith.constant 0 : index
    %90 = vector.load %arg4[%c0_29, %c0_30, %c0_31] : memref<1x6x8xf32, #tpu.memory_space<vmem>>, vector<1x6x8xf32>
    %91 = vector.shape_cast %90 : vector<1x6x8xf32> to vector<6x8xf32>
    %cst_32 = arith.constant dense<0.000000e+00> : vector<6x16xf32>
    %92 = tpu.matmul %91, %88, %cst_32 {dimension_numbers = #tpu.dot_dimension_numbers<[1], [0], [0], [1], [0, 0, 1, 1], [], []>} : vector<6x8xf32>, vector<8x16xf32>, vector<6x16xf32> -> vector<6x16xf32>
    %cst_33 = arith.constant 1.000000e+00 : f32
    %93 = vector.broadcast %cst_33 : f32 to vector<1x16xf32>
    %94 = arith.divf %93, %89 : vector<1x16xf32>
    %95 = vector.broadcast %94 : vector<1x16xf32> to vector<6x16xf32>
    %96 = arith.mulf %92, %95 : vector<6x16xf32>
    %c0_34 = arith.constant 0 : index
    %c0_35 = arith.constant 0 : index
    %97 = vector.load %arg6[%c0_34, %c0_35] : memref<32x6xf32, #tpu.memory_space<vmem>>, vector<32x6xf32>
    %cst_36 = arith.constant dense<0.000000e+00> : vector<32x16xf32>
    %98 = tpu.matmul %97, %96, %cst_36 {dimension_numbers = #tpu.dot_dimension_numbers<[1], [0], [0], [1], [0, 0, 1, 1], [], []>} : vector<32x6xf32>, vector<6x16xf32>, vector<32x16xf32> -> vector<32x16xf32>
    %c0_37 = arith.constant 0 : index
    %c0_38 = arith.constant 0 : index
    %c0_39 = arith.constant 0 : index
    %99 = vector.load %arg5[%c0_37, %c0_38, %c0_39] : memref<1x4x16xf32, #tpu.memory_space<vmem>>, vector<1x4x16xf32>
    %100 = vector.shape_cast %99 : vector<1x4x16xf32> to vector<4x16xf32>
    %c0_40 = arith.constant 0 : index
    %c0_41 = arith.constant 0 : index
    %101 = vector.load %arg7[%c0_40, %c0_41] : memref<32x4xf32, #tpu.memory_space<vmem>>, vector<32x4xf32>
    %cst_42 = arith.constant dense<0.000000e+00> : vector<32x16xf32>
    %102 = tpu.matmul %101, %100, %cst_42 {dimension_numbers = #tpu.dot_dimension_numbers<[1], [0], [0], [1], [0, 0, 1, 1], [], []>} : vector<32x4xf32>, vector<4x16xf32>, vector<32x16xf32> -> vector<32x16xf32>
    %103 = arith.addf %98, %102 : vector<32x16xf32>
    %c0_43 = arith.constant 0 : index
    %c0_44 = arith.constant 0 : index
    %104 = vector.load %arg8[%c0_43, %c0_44] : memref<32x1xf32, #tpu.memory_space<vmem>>, vector<32x1xf32>
    %105 = vector.broadcast %104 : vector<32x1xf32> to vector<32x16xf32>
    %106 = arith.addf %103, %105 : vector<32x16xf32>
    %cst_45 = arith.constant 0.000000e+00 : f32
    %107 = vector.broadcast %cst_45 : f32 to vector<32x16xf32>
    %108 = arith.maximumf %106, %107 : vector<32x16xf32>
    %c0_46 = arith.constant 0 : index
    %c0_47 = arith.constant 0 : index
    %109 = vector.load %arg9[%c0_46, %c0_47] : memref<16x32xf32, #tpu.memory_space<vmem>>, vector<16x32xf32>
    %cst_48 = arith.constant dense<0.000000e+00> : vector<16x16xf32>
    %110 = tpu.matmul %109, %108, %cst_48 {dimension_numbers = #tpu.dot_dimension_numbers<[1], [0], [0], [1], [0, 0, 1, 1], [], []>} : vector<16x32xf32>, vector<32x16xf32>, vector<16x16xf32> -> vector<16x16xf32>
    %c0_49 = arith.constant 0 : index
    %c0_50 = arith.constant 0 : index
    %111 = vector.load %arg10[%c0_49, %c0_50] : memref<16x1xf32, #tpu.memory_space<vmem>>, vector<16x1xf32>
    %112 = vector.broadcast %111 : vector<16x1xf32> to vector<16x16xf32>
    %113 = arith.addf %110, %112 : vector<16x16xf32>
    %cst_51 = arith.constant 0.000000e+00 : f32
    %114 = vector.broadcast %cst_51 : f32 to vector<16x16xf32>
    %115 = arith.maximumf %113, %114 : vector<16x16xf32>
    %c0_52 = arith.constant 0 : index
    %c0_53 = arith.constant 0 : index
    %c0_54 = arith.constant 0 : index
    %116 = vector.load %arg11[%c0_52, %c0_53, %c0_54] : memref<1x16x16xf32, #tpu.memory_space<vmem>>, vector<1x16x16xf32>
    %117 = vector.shape_cast %116 : vector<1x16x16xf32> to vector<16x16xf32>
    %118 = vector.shape_cast %115 : vector<16x16xf32> to vector<1x16x16xf32>
    tpu.vector_store %arg11[%c0_52, %c0_53, %c0_54], %118 {strides = array<i32>} : memref<1x16x16xf32, #tpu.memory_space<vmem>>, vector<1x16x16xf32>,
    return
  }
  func.func @transform_0(%arg0: i32, %arg1: i32) -> (i32, i32, i32) {
    %c0_i32 = arith.constant 0 : i32
    %c0_i32_0 = arith.constant 0 : i32
    return %arg0, %c0_i32, %arg1 : i32, i32, i32
  }
  func.func @transform_1(%arg0: i32, %arg1: i32) -> (i32, i32, i32) {
    %c0_i32 = arith.constant 0 : i32
    %c0_i32_0 = arith.constant 0 : i32
    %c0_i32_1 = arith.constant 0 : i32
    return %arg0, %c0_i32, %c0_i32_0 : i32, i32, i32
  }
  func.func @transform_2(%arg0: i32, %arg1: i32) -> (i32, i32, i32) {
    %c0_i32 = arith.constant 0 : i32
    %c0_i32_0 = arith.constant 0 : i32
    %c0_i32_1 = arith.constant 0 : i32
    return %arg0, %c0_i32, %c0_i32_0 : i32, i32, i32
  }
  func.func @transform_3(%arg0: i32, %arg1: i32) -> (i32, i32, i32) {
    %c0_i32 = arith.constant 0 : i32
    %c0_i32_0 = arith.constant 0 : i32
    return %arg0, %c0_i32, %arg1 : i32, i32, i32
  }
  func.func @transform_4(%arg0: i32, %arg1: i32) -> (i32, i32) {
    %c0_i32 = arith.constant 0 : i32
    %c0_i32_0 = arith.constant 0 : i32
    %c0_i32_1 = arith.constant 0 : i32
    return %c0_i32, %c0_i32_0 : i32, i32
  }
  func.func @transform_5(%arg0: i32, %arg1: i32) -> (i32, i32) {
    %c0_i32 = arith.constant 0 : i32
    %c0_i32_0 = arith.constant 0 : i32
    %c0_i32_1 = arith.constant 0 : i32
    return %c0_i32, %c0_i32_0 : i32, i32
  }
  func.func @transform_6(%arg0: i32, %arg1: i32) -> (i32, i32) {
    %c0_i32 = arith.constant 0 : i32
    %c0_i32_0 = arith.constant 0 : i32
    %c0_i32_1 = arith.constant 0 : i32
    return %c0_i32, %c0_i32_0 : i32, i32
  }
  func.func @transform_7(%arg0: i32, %arg1: i32) -> (i32, i32) {
    %c0_i32 = arith.constant 0 : i32
    %c0_i32_0 = arith.constant 0 : i32
    %c0_i32_1 = arith.constant 0 : i32
    return %c0_i32, %c0_i32_0 : i32, i32
  }
  func.func @transform_8(%arg0: i32, %arg1: i32) -> (i32, i32) {
    %c0_i32 = arith.constant 0 : i32
    %c0_i32_0 = arith.constant 0 : i32
    %c0_i32_1 = arith.constant 0 : i32
    return %c0_i32, %c0_i32_0 : i32, i32
  }
  func.func @transform_9(%arg0: i32, %arg1: i32) -> (i32, i32, i32) {
    %c0_i32 = arith.constant 0 : i32
    %c0_i32_0 = arith.constant 0 : i32
    return %arg0, %c0_i32, %arg1 : i32, i32, i32
  }
}

</mosaic_0001>

<llo_original>
// kernel: tpu_custom_call.1
$region0: #{tpu_custom_call.1}
  #allocation0 [shape = 'u32[]', space=smem, size = 0x4, offset = 0x4, fixed_abs, tag = 'smem constant byte address 0x4 - core index']
  #allocation1 [shape = 'u32[144,128]{1,0:T(1,128)}', space=vmem, size = 0x12000, scoped, tag = 'internal scratch']
  %s0 = inlined_call_operand.vmem [shape: f32[2,3,16], index: 0, kind: input, shape index: {}]
  %s1 = inlined_call_operand.vmem [shape: f32[2,8,3], index: 1, kind: input, shape index: {}]
  %s2 = inlined_call_operand.vmem [shape: f32[2,6,8], index: 2, kind: input, shape index: {}]
  %s3 = inlined_call_operand.vmem [shape: f32[2,4,16], index: 3, kind: input, shape index: {}]
  %s4 = inlined_call_operand.vmem [shape: f32[32,6], index: 4, kind: input, shape index: {}]
  %s5 = inlined_call_operand.vmem [shape: f32[32,4], index: 5, kind: input, shape index: {}]
  %s6 = inlined_call_operand.vmem [shape: f32[32,1], index: 6, kind: input, shape index: {}]
  %s7 = inlined_call_operand.vmem [shape: f32[16,32], index: 7, kind: input, shape index: {}]
  %s8 = inlined_call_operand.vmem [shape: f32[16,1], index: 8, kind: input, shape index: {}]
  %s9 = inlined_call_operand.hbm [shape: f32[2,16,16], index: 9, kind: output, shape index: {}]
  %s10 = sld [smem:[#allocation0]]
  $region69: #{tpu_custom_call.1} parent=0
    _
  %s12 = ssub.s32 1, %s10
  %s13 = scalar_select 0, %s12, %s10
  $region1: #{tpu_custom_call.1} parent=0
    #allocation2 [shape = 'u8[16384]{0}', space=vmem, size = 0x4000, scoped, tag = 'output window, operand 0']
    #allocation3 [shape = 's32[2]{0}', space=sflag, size = 0x8, scoped, tag = 'scoped memory for tpu_custom_call.1']
    %14 = vsyncpa [#allocation3], 0
    %s15 = scalar_lea.sflag [#allocation3], 1
    %16 = vsyncpa %s15, 0
    loop: start=0, step=1, limit=4
    $region2: #{tpu_custom_call.1} parent=1 // loop_pre_header
      _
    $region3: #{tpu_custom_call.1} parent=1 // loop_header
      %s18 = sphi 0, %s22
      %p19 = scmp.ge.s32.totalorder %s18, 4
      %s25 = sphi 0, %s37
      %s26 = sphi 0, %s33
      %s27 = sphi 0, %s25
      %s28 = sphi 0, %s26
      %s29 = sphi 0, %s27
      %s30 = sphi 0, %s28
      %s42 = sphi 0, %s44
      %s45 = sphi 0, %s42
      %s46 = sphi 0, %s45
      %s62 = sphi 0, %s46
      %s68 = sphi 0, %s70
      %s71 = sphi 0, %s68
      %s72 = sphi 0, %s71
      %s88 = sphi 0, %s72
      %s94 = sphi 0, %s96
      %s97 = sphi 0, %s94
      %s98 = sphi 0, %s97
      %s114 = sphi 0, %s98
      %s122 = sphi 0, %s124
      %s125 = sphi 0, %s122
      %s126 = sphi 0, %s125
      %s142 = sphi 0, %s126
      %s146 = sphi 0, %s146
      %s148 = sphi 0, %s146
      %s149 = sphi 0, %s148
      %s163 = sphi 0, %s149
      %s167 = sphi 0, %s167
      %s169 = sphi 0, %s167
      %s170 = sphi 0, %s169
      %s184 = sphi 0, %s170
      %s188 = sphi 0, %s188
      %s190 = sphi 0, %s188
      %s191 = sphi 0, %s190
      %s205 = sphi 0, %s191
      %s209 = sphi 0, %s209
      %s211 = sphi 0, %s209
      %s212 = sphi 0, %s211
      %s226 = sphi 0, %s212
      %s230 = sphi 0, %s230
      %s232 = sphi 0, %s230
      %s233 = sphi 0, %s232
      %s247 = sphi 0, %s233
      %s255 = sphi 0, %s257
      %s258 = sphi 0, %s255
      %s259 = sphi 0, %s258
      %s275 = sphi 0, %s259
    $region4: #{tpu_custom_call.1} parent=1 // loop_header_branch
      %21 = sbr.rel (%p19) target = $region8
    $region5: #{tpu_custom_call.1} parent=1 // loop_body
      %s23 = ssub.s32 %s18, 1
      %s24 = ssub.s32 %s18, 2
      %s31 = sadd.s32 1, %s26
      %p32 = scmp.ge.s32.totalorder %s31, 1
      %s33 = scalar_select %p32, 0, %s31
      %s34 = sadd.s32 1, %s25
      %s35 = scalar_select %p32, %s34, %s25
      %p36 = scmp.ge.s32.totalorder %s35, 2
      %s37 = scalar_select %p36, 0, %s35
      %s38 = ssub.s32 %s25, %s37
      %s39 = ssub.s32 %s26, %s33
      %s40 = sor.u32 %s38, %s39
      %p41 = scmp.eq.s32.totalorder %s40, 0
      %s43 = sadd.s32 %s42, 1
      %s44 = scalar_select %p41, %s42, %s43
      %p47 = pneg %p41
      %p48 = scmp.eq.s32.totalorder %s18, 1
      %p49 = por %p47, %p48
      %p50 = scmp.ne.s32.totalorder %s42, %s45
      %p51 = scmp.eq.s32.totalorder %s18, 0
      %p52 = por %p50, %p51
      %p53 = scmp.ne.s32.totalorder %s42, %s45
      %p54 = scmp.eq.s32.totalorder %s23, 1
      %p55 = por %p53, %p54
      %p56 = scmp.ne.s32.totalorder %s45, %s46
      %p57 = scmp.eq.s32.totalorder %s23, 0
      %p58 = por %p56, %p57
      %p59 = scmp.ne.s32.totalorder %s45, %s46
      %p60 = scmp.eq.s32.totalorder %s24, 1
      %p61 = por %p59, %p60
      %p63 = scmp.ne.s32.totalorder %s46, %s62
      %p64 = scmp.eq.s32.totalorder %s24, 0
      %p65 = por %p63, %p64
      %s66 = ssub.s32 %s25, %s37
      %p67 = scmp.eq.s32.totalorder %s66, 0
      %s69 = sadd.s32 %s68, 1
      %s70 = scalar_select %p67, %s68, %s69
      %p73 = pneg %p67
      %p74 = scmp.eq.s32.totalorder %s18, 1
      %p75 = por %p73, %p74
      %p76 = scmp.ne.s32.totalorder %s68, %s71
      %p77 = scmp.eq.s32.totalorder %s18, 0
      %p78 = por %p76, %p77
      %p79 = scmp.ne.s32.totalorder %s68, %s71
      %p80 = scmp.eq.s32.totalorder %s23, 1
      %p81 = por %p79, %p80
      %p82 = scmp.ne.s32.totalorder %s71, %s72
      %p83 = scmp.eq.s32.totalorder %s23, 0
      %p84 = por %p82, %p83
      %p85 = scmp.ne.s32.totalorder %s71, %s72
      %p86 = scmp.eq.s32.totalorder %s24, 1
      %p87 = por %p85, %p86
      %p89 = scmp.ne.s32.totalorder %s72, %s88
      %p90 = scmp.eq.s32.totalorder %s24, 0
      %p91 = por %p89, %p90
      %s92 = ssub.s32 %s25, %s37
      %p93 = scmp.eq.s32.totalorder %s92, 0
      %s95 = sadd.s32 %s94, 1
      %s96 = scalar_select %p93, %s94, %s95
      %p99 = pneg %p93
      %p100 = scmp.eq.s32.totalorder %s18, 1
      %p101 = por %p99, %p100
      %p102 = scmp.ne.s32.totalorder %s94, %s97
      %p103 = scmp.eq.s32.totalorder %s18, 0
      %p104 = por %p102, %p103
      %p105 = scmp.ne.s32.totalorder %s94, %s97
      %p106 = scmp.eq.s32.totalorder %s23, 1
      %p107 = por %p105, %p106
      %p108 = scmp.ne.s32.totalorder %s97, %s98
      %p109 = scmp.eq.s32.totalorder %s23, 0
      %p110 = por %p108, %p109
      %p111 = scmp.ne.s32.totalorder %s97, %s98
      %p112 = scmp.eq.s32.totalorder %s24, 1
      %p113 = por %p111, %p112
      %p115 = scmp.ne.s32.totalorder %s98, %s114
      %p116 = scmp.eq.s32.totalorder %s24, 0
      %p117 = por %p115, %p116
      %s118 = ssub.s32 %s25, %s37
      %s119 = ssub.s32 %s26, %s33
      %s120 = sor.u32 %s118, %s119
      %p121 = scmp.eq.s32.totalorder %s120, 0
      %s123 = sadd.s32 %s122, 1
      %s124 = scalar_select %p121, %s122, %s123
      %p127 = pneg %p121
      %p128 = scmp.eq.s32.totalorder %s18, 1
      %p129 = por %p127, %p128
      %p130 = scmp.ne.s32.totalorder %s122, %s125
      %p131 = scmp.eq.s32.totalorder %s18, 0
      %p132 = por %p130, %p131
      %p133 = scmp.ne.s32.totalorder %s122, %s125
      %p134 = scmp.eq.s32.totalorder %s23, 1
      %p135 = por %p133, %p134
      %p136 = scmp.ne.s32.totalorder %s125, %s126
      %p137 = scmp.eq.s32.totalorder %s23, 0
      %p138 = por %p136, %p137
      %p139 = scmp.ne.s32.totalorder %s125, %s126
      %p140 = scmp.eq.s32.totalorder %s24, 1
      %p141 = por %p139, %p140
      %p143 = scmp.ne.s32.totalorder %s126, %s142
      %p144 = scmp.eq.s32.totalorder %s24, 0
      %p145 = por %p143, %p144
      %s147 = sadd.s32 %s146, 1
      %p150 = scmp.eq.s32.totalorder %s18, 1
      %p151 = scmp.ne.s32.totalorder %s146, %s148
      %p152 = scmp.eq.s32.totalorder %s18, 0
      %p153 = por %p151, %p152
      %p154 = scmp.ne.s32.totalorder %s146, %s148
      %p155 = scmp.eq.s32.totalorder %s23, 1
      %p156 = por %p154, %p155
      %p157 = scmp.ne.s32.totalorder %s148, %s149
      %p158 = scmp.eq.s32.totalorder %s23, 0
      %p159 = por %p157, %p158
      %p160 = scmp.ne.s32.totalorder %s148, %s149
      %p161 = scmp.eq.s32.totalorder %s24, 1
      %p162 = por %p160, %p161
      %p164 = scmp.ne.s32.totalorder %s149, %s163
      %p165 = scmp.eq.s32.totalorder %s24, 0
      %p166 = por %p164, %p165
      %s168 = sadd.s32 %s167, 1
      %p171 = scmp.eq.s32.totalorder %s18, 1
      %p172 = scmp.ne.s32.totalorder %s167, %s169
      %p173 = scmp.eq.s32.totalorder %s18, 0
      %p174 = por %p172, %p173
      %p175 = scmp.ne.s32.totalorder %s167, %s169
      %p176 = scmp.eq.s32.totalorder %s23, 1
      %p177 = por %p175, %p176
      %p178 = scmp.ne.s32.totalorder %s169, %s170
      %p179 = scmp.eq.s32.totalorder %s23, 0
      %p180 = por %p178, %p179
      %p181 = scmp.ne.s32.totalorder %s169, %s170
      %p182 = scmp.eq.s32.totalorder %s24, 1
      %p183 = por %p181, %p182
      %p185 = scmp.ne.s32.totalorder %s170, %s184
      %p186 = scmp.eq.s32.totalorder %s24, 0
      %p187 = por %p185, %p186
      %s189 = sadd.s32 %s188, 1
      %p192 = scmp.eq.s32.totalorder %s18, 1
      %p193 = scmp.ne.s32.totalorder %s188, %s190
      %p194 = scmp.eq.s32.totalorder %s18, 0
      %p195 = por %p193, %p194
      %p196 = scmp.ne.s32.totalorder %s188, %s190
      %p197 = scmp.eq.s32.totalorder %s23, 1
      %p198 = por %p196, %p197
      %p199 = scmp.ne.s32.totalorder %s190, %s191
      %p200 = scmp.eq.s32.totalorder %s23, 0
      %p201 = por %p199, %p200
      %p202 = scmp.ne.s32.totalorder %s190, %s191
      %p203 = scmp.eq.s32.totalorder %s24, 1
      %p204 = por %p202, %p203
      %p206 = scmp.ne.s32.totalorder %s191, %s205
      %p207 = scmp.eq.s32.totalorder %s24, 0
      %p208 = por %p206, %p207
      %s210 = sadd.s32 %s209, 1
      %p213 = scmp.eq.s32.totalorder %s18, 1
      %p214 = scmp.ne.s32.totalorder %s209, %s211
      %p215 = scmp.eq.s32.totalorder %s18, 0
      %p216 = por %p214, %p215
      %p217 = scmp.ne.s32.totalorder %s209, %s211
      %p218 = scmp.eq.s32.totalorder %s23, 1
      %p219 = por %p217, %p218
      %p220 = scmp.ne.s32.totalorder %s211, %s212
      %p221 = scmp.eq.s32.totalorder %s23, 0
      %p222 = por %p220, %p221
      %p223 = scmp.ne.s32.totalorder %s211, %s212
      %p224 = scmp.eq.s32.totalorder %s24, 1
      %p225 = por %p223, %p224
      %p227 = scmp.ne.s32.totalorder %s212, %s226
      %p228 = scmp.eq.s32.totalorder %s24, 0
      %p229 = por %p227, %p228
      %s231 = sadd.s32 %s230, 1
      %p234 = scmp.eq.s32.totalorder %s18, 1
      %p235 = scmp.ne.s32.totalorder %s230, %s232
      %p236 = scmp.eq.s32.totalorder %s18, 0
      %p237 = por %p235, %p236
      %p238 = scmp.ne.s32.totalorder %s230, %s232
      %p239 = scmp.eq.s32.totalorder %s23, 1
      %p240 = por %p238, %p239
      %p241 = scmp.ne.s32.totalorder %s232, %s233
      %p242 = scmp.eq.s32.totalorder %s23, 0
      %p243 = por %p241, %p242
      %p244 = scmp.ne.s32.totalorder %s232, %s233
      %p245 = scmp.eq.s32.totalorder %s24, 1
      %p246 = por %p244, %p245
      %p248 = scmp.ne.s32.totalorder %s233, %s247
      %p249 = scmp.eq.s32.totalorder %s24, 0
      %p250 = por %p248, %p249
      %s251 = ssub.s32 %s25, %s37
      %s252 = ssub.s32 %s26, %s33
      %s253 = sor.u32 %s251, %s252
      %p254 = scmp.eq.s32.totalorder %s253, 0
      %s256 = sadd.s32 %s255, 1
      %s257 = scalar_select %p254, %s255, %s256
      %p260 = pneg %p254
      %p261 = scmp.eq.s32.totalorder %s18, 1
      %p262 = por %p260, %p261
      %p263 = scmp.ne.s32.totalorder %s255, %s258
      %p264 = scmp.eq.s32.totalorder %s18, 0
      %p265 = por %p263, %p264
      %p266 = scmp.ne.s32.totalorder %s255, %s258
      %p267 = scmp.eq.s32.totalorder %s23, 1
      %p268 = por %p266, %p267
      %p269 = scmp.ne.s32.totalorder %s258, %s259
      %p270 = scmp.eq.s32.totalorder %s23, 0
      %p271 = por %p269, %p270
      %p272 = scmp.ne.s32.totalorder %s258, %s259
      %p273 = scmp.eq.s32.totalorder %s24, 1
      %p274 = por %p272, %p273
      %p276 = scmp.ne.s32.totalorder %s259, %s275
      %p277 = scmp.eq.s32.totalorder %s24, 0
      %p278 = por %p276, %p277
      %p279 = scmp.le.s32.totalorder 1, %s18
      %p280 = scmp.lt.s32.totalorder %s18, 3
      %p281 = pnand %p279, %p280
      %p282 = pneg %p281
      // Predicated region
      $region9: #{tpu_custom_call.1} parent=5 // pred_check
        _
      $region10: #{tpu_custom_call.1} parent=5 // pred_check_branch
        %284 = sbr.rel (%p281) target = $region12
      $region11: #{tpu_custom_call.1} parent=5 // pred_region
        %s285 = ssub.s32 %s18, 1
        // Predicated region
        $region13: #{tpu_custom_call.1} parent=11 // pred_check
          %p286 = pneg %p159
        $region14: #{tpu_custom_call.1} parent=11 // pred_check_branch
          %288 = sbr.rel (%p286) target = $region16
        $region15: #{tpu_custom_call.1} parent=11 // pred_region
          _
        $region16: #{tpu_custom_call.1} parent=11 // pred_fallthru
          _
        // Predicated region
        $region17: #{tpu_custom_call.1} parent=11 // pred_check
          %p289 = pneg %p180
        $region18: #{tpu_custom_call.1} parent=11 // pred_check_branch
          %291 = sbr.rel (%p289) target = $region20
        $region19: #{tpu_custom_call.1} parent=11 // pred_region
          _
        $region20: #{tpu_custom_call.1} parent=11 // pred_fallthru
          _
        // Predicated region
        $region21: #{tpu_custom_call.1} parent=11 // pred_check
          %p292 = pneg %p201
        $region22: #{tpu_custom_call.1} parent=11 // pred_check_branch
          %294 = sbr.rel (%p292) target = $region24
        $region23: #{tpu_custom_call.1} parent=11 // pred_region
          _
        $region24: #{tpu_custom_call.1} parent=11 // pred_fallthru
          _
        // Predicated region
        $region25: #{tpu_custom_call.1} parent=11 // pred_check
          %p295 = pneg %p222
        $region26: #{tpu_custom_call.1} parent=11 // pred_check_branch
          %297 = sbr.rel (%p295) target = $region28
        $region27: #{tpu_custom_call.1} parent=11 // pred_region
          _
        $region28: #{tpu_custom_call.1} parent=11 // pred_fallthru
          _
        // Predicated region
        $region29: #{tpu_custom_call.1} parent=11 // pred_check
          %p298 = pneg %p243
        $region30: #{tpu_custom_call.1} parent=11 // pred_check_branch
          %300 = sbr.rel (%p298) target = $region32
        $region31: #{tpu_custom_call.1} parent=11 // pred_region
          _
        $region32: #{tpu_custom_call.1} parent=11 // pred_fallthru
          _
      $region12: #{tpu_custom_call.1} parent=5 // pred_fallthru
        _
      %p301 = scmp.lt.s32.totalorder %s18, 2
      // Predicated region
      $region33: #{tpu_custom_call.1} parent=5 // pred_check
        %p302 = pneg %p301
      $region34: #{tpu_custom_call.1} parent=5 // pred_check_branch
        %304 = sbr.rel (%p302) target = $region36
      $region35: #{tpu_custom_call.1} parent=5 // pred_region
        // Predicated region
        $region37: #{tpu_custom_call.1} parent=35 // pred_check
          %p305 = pneg %p52
        $region38: #{tpu_custom_call.1} parent=35 // pred_check_branch
          %307 = sbr.rel (%p305) target = $region40
        $region39: #{tpu_custom_call.1} parent=35 // pred_region
          %p308 = scmp.lt.s32.totalorder %s25, 1
          %s309 = scalar_select %p308, %s25, 1
          %p310 = scmp.lt.s32.totalorder %s26, 0
          %s311 = scalar_select %p310, %s26, 0
          %s312 = sadd.s32 %s311, %s309
          %s313 = smul.addr %s312, 4
          %s314 = scalar_lea.vmem %s0, %s313
        $region40: #{tpu_custom_call.1} parent=35 // pred_fallthru
          _
        // Predicated region
        $region41: #{tpu_custom_call.1} parent=35 // pred_check
          %p315 = pneg %p78
        $region42: #{tpu_custom_call.1} parent=35 // pred_check_branch
          %317 = sbr.rel (%p315) target = $region44
        $region43: #{tpu_custom_call.1} parent=35 // pred_region
          %p318 = scmp.lt.s32.totalorder %s25, 1
          %s319 = scalar_select %p318, %s25, 1
          %s320 = smul.addr %s319, 8
          %s321 = scalar_lea.vmem %s1, %s320
        $region44: #{tpu_custom_call.1} parent=35 // pred_fallthru
          _
        // Predicated region
        $region45: #{tpu_custom_call.1} parent=35 // pred_check
          %p322 = pneg %p104
        $region46: #{tpu_custom_call.1} parent=35 // pred_check_branch
          %324 = sbr.rel (%p322) target = $region48
        $region47: #{tpu_custom_call.1} parent=35 // pred_region
          %p325 = scmp.lt.s32.totalorder %s25, 1
          %s326 = scalar_select %p325, %s25, 1
          %s327 = smul.addr %s326, 8
          %s328 = scalar_lea.vmem %s2, %s327
        $region48: #{tpu_custom_call.1} parent=35 // pred_fallthru
          _
        // Predicated region
        $region49: #{tpu_custom_call.1} parent=35 // pred_check
          %p329 = pneg %p132
        $region50: #{tpu_custom_call.1} parent=35 // pred_check_branch
          %331 = sbr.rel (%p329) target = $region52
        $region51: #{tpu_custom_call.1} parent=35 // pred_region
          %p332 = scmp.lt.s32.totalorder %s25, 1
          %s333 = scalar_select %p332, %s25, 1
          %p334 = scmp.lt.s32.totalorder %s26, 0
          %s335 = scalar_select %p334, %s26, 0
          %s336 = sadd.s32 %s335, %s333
          %s337 = smul.addr %s336, 4
          %s338 = scalar_lea.vmem %s3, %s337
        $region52: #{tpu_custom_call.1} parent=35 // pred_fallthru
          _
      $region36: #{tpu_custom_call.1} parent=5 // pred_fallthru
        _
      %p339 = scmp.le.s32.totalorder 1, %s18
      %p340 = scmp.lt.s32.totalorder %s18, 3
      %p341 = pnand %p339, %p340
      %p342 = pneg %p341
      // Predicated region
      $region53: #{tpu_custom_call.1} parent=5 // pred_check
        _
      $region54: #{tpu_custom_call.1} parent=5 // pred_check_branch
        %344 = sbr.rel (%p341) target = $region56
      $region55: #{tpu_custom_call.1} parent=5 // pred_region
        %s345 = ssub.s32 %s18, 1
        %p346 = scmp.lt.s32.totalorder %s27, 1
        %s347 = scalar_select %p346, %s27, 1
        %p348 = scmp.lt.s32.totalorder %s28, 0
        %s349 = scalar_select %p348, %s28, 0
        %s350 = sadd.s32 %s349, %s347
        %s351 = smul.addr %s350, 4
        %s352 = scalar_lea.vmem %s0, %s351
        %p353 = pneg %p58
        %p354 = pneg %p55
        %p355 = scmp.lt.s32.totalorder %s27, 1
        %s356 = scalar_select %p355, %s27, 1
        %s357 = smul.addr %s356, 8
        %s358 = scalar_lea.vmem %s1, %s357
        %p359 = pneg %p84
        %p360 = pneg %p81
        %p361 = scmp.lt.s32.totalorder %s27, 1
        %s362 = scalar_select %p361, %s27, 1
        %s363 = smul.addr %s362, 8
        %s364 = scalar_lea.vmem %s2, %s363
        %p365 = pneg %p110
        %p366 = pneg %p107
        %p367 = scmp.lt.s32.totalorder %s27, 1
        %s368 = scalar_select %p367, %s27, 1
        %p369 = scmp.lt.s32.totalorder %s28, 0
        %s370 = scalar_select %p369, %s28, 0
        %s371 = sadd.s32 %s370, %s368
        %s372 = smul.addr %s371, 4
        %s373 = scalar_lea.vmem %s3, %s372
        %p374 = pneg %p138
        %p375 = pneg %p135
        %p376 = pneg %p159
        %p377 = pneg %p156
        %p378 = pneg %p180
        %p379 = pneg %p177
        %p380 = pneg %p201
        %p381 = pneg %p198
        %p382 = pneg %p222
        %p383 = pneg %p219
        %p384 = pneg %p243
        %p385 = pneg %p240
        %p386 = pneg %p271
        %p387 = pneg %p268
        %s388 = sand.u32 %s258, 1
        %s389 = scalar_lea.sflag [#allocation3], %s388
        %s390 = sand.u32 %s258, 1
        %s391 = smul.addr %s390, 16
        %s392 = scalar_lea.vmem [#allocation2], %s391
        %p393 = scmp.lt.s32.totalorder %s27, 1
        %s394 = scalar_select %p393, %s27, 1
        %p395 = scmp.lt.s32.totalorder %s28, 0
        %s396 = scalar_select %p395, %s28, 0
        %s397 = sadd.s32 %s396, %s394
        %s398 = smul.addr %s397, 4
        %s399 = scalar_lea.vmem %s0, %s398
        %p400 = scmp.lt.s32.totalorder %s27, 1
        %s401 = scalar_select %p400, %s27, 1
        %s402 = smul.addr %s401, 8
        %s403 = scalar_lea.vmem %s1, %s402
        %p404 = scmp.lt.s32.totalorder %s27, 1
        %s405 = scalar_select %p404, %s27, 1
        %s406 = smul.addr %s405, 8
        %s407 = scalar_lea.vmem %s2, %s406
        %p408 = scmp.lt.s32.totalorder %s27, 1
        %s409 = scalar_select %p408, %s27, 1
        %p410 = scmp.lt.s32.totalorder %s28, 0
        %s411 = scalar_select %p410, %s28, 0
        %s412 = sadd.s32 %s411, %s409
        %s413 = smul.addr %s412, 4
        %s414 = scalar_lea.vmem %s3, %s413
        %v415 = vld [vmem:[%s399] sm:$0x7]
        %v416 = vld [vmem:[%s403] sm:$0xff]
        %vm417 = vcmask 23552
        %v419 = vsel %vm417, %v416, 0
        %vm421 = vcmask 1042432
        %v423 = vsel %vm421, %v415, 0
        %425 = vmatprep.subr.mxu0 0.0
        %426 = vmatpush1.msra.mxu0 0.0
        %427 = vmatprep.subr.mxu0 0.0
        %428 = vmatpush1.msra.mxu0 0.0
        %429 = vmatprep.subr.mxu0 0.0
        %430 = vmatpush1.msra.mxu0 0.0
        %431 = vmatprep.subr.mxu0 0.0
        %432 = vmatpush1.msra.mxu0 0.0
        %433 = vmatprep.subr.mxu0 0.0
        %434 = vmatpush1.msra.mxu0 0.0
        %435 = vmatprep.subr.mxu0 0.0
        %436 = vmatpush1.msra.mxu0 0.0
        %437 = vmatprep.subr.mxu0 0.0
        %438 = vmatpush1.msra.mxu0 0.0
        %439 = vmatprep.subr.mxu0 0.0
        %440 = vmatpush1.msra.mxu0 0.0
        %441 = vmatprep.subr.mxu0 0.0
        %442 = vmatpush1.msra.mxu0 0.0
        %443 = vmatprep.subr.mxu0 0.0
        %444 = vmatpush1.msra.mxu0 0.0
        %445 = vmatprep.subr.mxu0 0.0
        %446 = vmatpush1.msra.mxu0 0.0
        %447 = vmatprep.subr.mxu0 0.0
        %448 = vmatpush1.msra.mxu0 0.0
        %449 = vmatprep.subr.mxu0 0.0
        %450 = vmatpush1.msra.mxu0 0.0
        %451 = vmatprep.subr.mxu0 0.0
        %452 = vmatpush1.msra.mxu0 0.0
        %453 = vmatprep.subr.mxu0 0.0
        %454 = vmatpush1.msra.mxu0 0.0
        %455 = vmatprep.subr.mxu0 0.0
        %456 = vmatpush1.msra.mxu0 %v423
        %457 = vmatprep.subr.mxu0 0.0
        %458 = vmatpush2.msra.mxu0 0.0
        %459 = vmatprep.subr.mxu0 0.0
        %460 = vmatpush2.msra.mxu0 0.0
        %461 = vmatprep.subr.mxu0 0.0
        %462 = vmatpush2.msra.mxu0 0.0
        %463 = vmatprep.subr.mxu0 0.0
        %464 = vmatpush2.msra.mxu0 0.0
        %465 = vmatprep.subr.mxu0 0.0
        %466 = vmatpush2.msra.mxu0 0.0
        %467 = vmatprep.subr.mxu0 0.0
        %468 = vmatpush2.msra.mxu0 0.0
        %469 = vmatprep.subr.mxu0 0.0
        %470 = vmatpush2.msra.mxu0 0.0
        %471 = vmatprep.subr.mxu0 0.0
        %472 = vmatpush2.msra.mxu0 0.0
        %473 = vmatprep.subr.mxu0 0.0
        %474 = vmatpush2.msra.mxu0 0.0
        %475 = vmatprep.subr.mxu0 0.0
        %476 = vmatpush2.msra.mxu0 0.0
        %477 = vmatprep.subr.mxu0 0.0
        %478 = vmatpush2.msra.mxu0 0.0
        %479 = vmatprep.subr.mxu0 0.0
        %480 = vmatpush2.msra.mxu0 0.0
        %481 = vmatprep.subr.mxu0 0.0
        %482 = vmatpush2.msra.mxu0 0.0
        %483 = vmatprep.subr.mxu0 0.0
        %484 = vmatpush2.msra.mxu0 0.0
        %485 = vmatprep.subr.mxu0 0.0
        %486 = vmatpush2.msra.mxu0 0.0
        %487 = vmatprep.subr.mxu0 0.0
        %488 = vmatpush2.msra.mxu0 0.0
        %489 = vmatprep.mubr.f32.mxu0 0.0
        %490 = vmatmul.mubr.f32.gmra.mxu0 %v419
        %v491 = vpop.f32.mrf.mxu0
        %v492 = vadd.f32 0.0, %v491
        %v493 = vpop.f32.mrf.mxu0
        %494 = vdwg.mxu0
        %v495 = vmul.f32 %v416, %v416
        %v496 = vsel %vm417, %v495, 0.0
        %497 = vadd.xlane.f32.xlu0 %v496
        %v498 = vpop.xlane.xlu0 %497
        %v499 = vmul.f32 %v415, %v415
        %vm500 = vcmask 124928
        %v501 = vsel %vm500, %v499, 0.0
        %v502 = vrot.slane %v501, 4
        %v503 = vadd.f32 %v501, %v502
        %v504 = vrot.slane %v503, 2
        %v505 = vadd.f32 %v503, %v504
        %v506 = vrot.slane %v505, 1
        %v507 = vadd.f32 %v505, %v506
        %v508 = vadd.f32 %v498, %v507
        %v509 = vmul.f32 %v492, 2.0
        %v510 = vsub.f32 %v508, %v509
        %v511 = vmax.f32 %v510, 0.0
        %v512 = vlaneseq
        %v513 = vshrl.u32 %v512, 7
        %vm514 = vcmask 130048
        %v515 = vsel %vm514, %v511, inf
        %v516 = vrot.slane %v515, 4
        %v517 = vmin.f32 %v515, %v516
        %v518 = vrot.slane %v517, 2
        %v519 = vmin.f32 %v517, %v518
        %v520 = vrot.slane %v519, 1
        %v521 = vmin.f32 %v519, %v520
        %vm522 = vcmp.eq.f32.partialorder %v511, %v521
        %v523 = vsel %vm522, %v513, 8
        %v524 = vsel %vm514, %v523, 2147483647
        %v525 = vrot.slane %v524, 4
        %vm526 = vcmp.lt.s32.totalorder %v524, %v525
        %v527 = vsel %vm526, %v524, %v525
        %v528 = vrot.slane %v527, 2
        %vm529 = vcmp.lt.s32.totalorder %v527, %v528
        %v530 = vsel %vm529, %v527, %v528
        %v531 = vrot.slane %v530, 1
        %vm532 = vcmp.lt.s32.totalorder %v530, %v531
        %v533 = vsel %vm532, %v530, %v531
        %vm534 = vcmp.eq.s32.totalorder %v513, %v533
        %v535 = vsel %vm534, 1, 0
        %v536 = vcvt.s32.f32 %v535
        %v537 = vadd.f32 %v521, 1e-08
        %v538 = vrcp.pop %v537
        %v539 = vmul.f32 1.0, %v538
        %v540 = vmul.f32 %v536, %v539
        %v541 = vadd.f32 %v540, 0.0
        %v542 = vadd.f32 %v539, 0.0
        %vm543 = vcmp.gt.f32.partialorder %v536, 0.0
        %v544 = vsel %vm543, 1e+30, %v511
        %v545 = vsel %vm514, %v544, inf
        %v546 = vrot.slane %v545, 4
        %v547 = vmin.f32 %v545, %v546
        %v548 = vrot.slane %v547, 2
        %v549 = vmin.f32 %v547, %v548
        %v550 = vrot.slane %v549, 1
        %v551 = vmin.f32 %v549, %v550
        %vm552 = vcmp.eq.f32.partialorder %v544, %v551
        %v553 = vsel %vm552, %v513, 8
        %v554 = vsel %vm514, %v553, 2147483647
        %v555 = vrot.slane %v554, 4
        %vm556 = vcmp.lt.s32.totalorder %v554, %v555
        %v557 = vsel %vm556, %v554, %v555
        %v558 = vrot.slane %v557, 2
        %vm559 = vcmp.lt.s32.totalorder %v557, %v558
        %v560 = vsel %vm559, %v557, %v558
        %v561 = vrot.slane %v560, 1
        %vm562 = vcmp.lt.s32.totalorder %v560, %v561
        %v563 = vsel %vm562, %v560, %v561
        %vm564 = vcmp.eq.s32.totalorder %v513, %v563
        %v565 = vsel %vm564, 1, 0
        %v566 = vcvt.s32.f32 %v565
        %v567 = vadd.f32 %v551, 1e-08
        %v568 = vrcp.pop %v567
        %v569 = vmul.f32 1.0, %v568
        %v570 = vmul.f32 %v566, %v569
        %v571 = vadd.f32 %v541, %v570
        %v572 = vadd.f32 %v542, %v569
        %vm573 = vcmp.gt.f32.partialorder %v566, 0.0
        %v574 = vsel %vm573, 1e+30, %v544
        %v575 = vsel %vm514, %v574, inf
        %v576 = vrot.slane %v575, 4
        %v577 = vmin.f32 %v575, %v576
        %v578 = vrot.slane %v577, 2
        %v579 = vmin.f32 %v577, %v578
        %v580 = vrot.slane %v579, 1
        %v581 = vmin.f32 %v579, %v580
        %vm582 = vcmp.eq.f32.partialorder %v574, %v581
        %v583 = vsel %vm582, %v513, 8
        %v584 = vsel %vm514, %v583, 2147483647
        %v585 = vrot.slane %v584, 4
        %vm586 = vcmp.lt.s32.totalorder %v584, %v585
        %v587 = vsel %vm586, %v584, %v585
        %v588 = vrot.slane %v587, 2
        %vm589 = vcmp.lt.s32.totalorder %v587, %v588
        %v590 = vsel %vm589, %v587, %v588
        %v591 = vrot.slane %v590, 1
        %vm592 = vcmp.lt.s32.totalorder %v590, %v591
        %v593 = vsel %vm592, %v590, %v591
        %vm594 = vcmp.eq.s32.totalorder %v513, %v593
        %v595 = vsel %vm594, 1, 0
        %v596 = vcvt.s32.f32 %v595
        %v597 = vadd.f32 %v581, 1e-08
        %v598 = vrcp.pop %v597
        %v599 = vmul.f32 1.0, %v598
        %v600 = vmul.f32 %v596, %v599
        %v601 = vadd.f32 %v571, %v600
        %v602 = vadd.f32 %v572, %v599
        %v603 = vld [vmem:[%s407] sm:$0x3f]
        %vm604 = vcmask 64512
        %v606 = vsel %vm604, %v603, 0
        %608 = vmatprep.subr.mxu0 0.0
        %609 = vmatpush1.msra.mxu0 0.0
        %610 = vmatprep.subr.mxu0 0.0
        %611 = vmatpush1.msra.mxu0 0.0
        %612 = vmatprep.subr.mxu0 0.0
        %613 = vmatpush1.msra.mxu0 0.0
        %614 = vmatprep.subr.mxu0 0.0
        %615 = vmatpush1.msra.mxu0 0.0
        %616 = vmatprep.subr.mxu0 0.0
        %617 = vmatpush1.msra.mxu0 0.0
        %618 = vmatprep.subr.mxu0 0.0
        %619 = vmatpush1.msra.mxu0 0.0
        %620 = vmatprep.subr.mxu0 0.0
        %621 = vmatpush1.msra.mxu0 0.0
        %622 = vmatprep.subr.mxu0 0.0
        %623 = vmatpush1.msra.mxu0 0.0
        %624 = vmatprep.subr.mxu0 0.0
        %625 = vmatpush1.msra.mxu0 0.0
        %626 = vmatprep.subr.mxu0 0.0
        %627 = vmatpush1.msra.mxu0 0.0
        %628 = vmatprep.subr.mxu0 0.0
        %629 = vmatpush1.msra.mxu0 0.0
        %630 = vmatprep.subr.mxu0 0.0
        %631 = vmatpush1.msra.mxu0 0.0
        %632 = vmatprep.subr.mxu0 0.0
        %633 = vmatpush1.msra.mxu0 0.0
        %634 = vmatprep.subr.mxu0 0.0
        %635 = vmatpush1.msra.mxu0 0.0
        %636 = vmatprep.subr.mxu0 0.0
        %637 = vmatpush1.msra.mxu0 0.0
        %638 = vmatprep.subr.mxu0 0.0
        %639 = vmatpush1.msra.mxu0 %v601
        %640 = vmatprep.subr.mxu0 0.0
        %641 = vmatpush2.msra.mxu0 0.0
        %642 = vmatprep.subr.mxu0 0.0
        %643 = vmatpush2.msra.mxu0 0.0
        %644 = vmatprep.subr.mxu0 0.0
        %645 = vmatpush2.msra.mxu0 0.0
        %646 = vmatprep.subr.mxu0 0.0
        %647 = vmatpush2.msra.mxu0 0.0
        %648 = vmatprep.subr.mxu0 0.0
        %649 = vmatpush2.msra.mxu0 0.0
        %650 = vmatprep.subr.mxu0 0.0
        %651 = vmatpush2.msra.mxu0 0.0
        %652 = vmatprep.subr.mxu0 0.0
        %653 = vmatpush2.msra.mxu0 0.0
        %654 = vmatprep.subr.mxu0 0.0
        %655 = vmatpush2.msra.mxu0 0.0
        %656 = vmatprep.subr.mxu0 0.0
        %657 = vmatpush2.msra.mxu0 0.0
        %658 = vmatprep.subr.mxu0 0.0
        %659 = vmatpush2.msra.mxu0 0.0
        %660 = vmatprep.subr.mxu0 0.0
        %661 = vmatpush2.msra.mxu0 0.0
        %662 = vmatprep.subr.mxu0 0.0
        %663 = vmatpush2.msra.mxu0 0.0
        %664 = vmatprep.subr.mxu0 0.0
        %665 = vmatpush2.msra.mxu0 0.0
        %666 = vmatprep.subr.mxu0 0.0
        %667 = vmatpush2.msra.mxu0 0.0
        %668 = vmatprep.subr.mxu0 0.0
        %669 = vmatpush2.msra.mxu0 0.0
        %670 = vmatprep.subr.mxu0 0.0
        %671 = vmatpush2.msra.mxu0 0.0
        %672 = vmatprep.mubr.f32.mxu0 0.0
        %673 = vmatmul.mubr.f32.gmra.mxu0 %v606
        %v674 = vpop.f32.mrf.mxu0
        %v675 = vadd.f32 0.0, %v674
        %v676 = vpop.f32.mrf.mxu0
        %677 = vdwg.mxu0
        %v678 = vrcp.pop %v602
        %v679 = vmul.f32 1.0, %v678
        %v680 = vmul.f32 %v675, %v679
        %v681 = vld [vmem:[%s4] sm:$0xff]
        %v682 = vld [vmem:[%s4 + $0x8] sm:$0xff]
        %v683 = vld [vmem:[%s4 + $0x10] sm:$0xff]
        %v684 = vld [vmem:[%s4 + $0x18] sm:$0xff]
        %v685 = vld [vmem:[%s414] sm:$0xf]
        %v686 = vld [vmem:[%s5] sm:$0xff]
        %v687 = vld [vmem:[%s5 + $0x8] sm:$0xff]
        %v688 = vld [vmem:[%s5 + $0x10] sm:$0xff]
        %v689 = vld [vmem:[%s5 + $0x18] sm:$0xff]
        %vm690 = vcmask 31744
        %v692 = vsel %vm690, %v686, 0
        %v695 = vsel %vm690, %v687, 0
        %v698 = vsel %vm690, %v688, 0
        %v701 = vsel %vm690, %v689, 0
        %vm703 = vcmask 1043456
        %v705 = vsel %vm703, %v685, 0
        %707 = vmatprep.subr.mxu0 0.0
        %708 = vmatpush1.msra.mxu0 0.0
        %709 = vmatprep.subr.mxu0 0.0
        %710 = vmatpush1.msra.mxu0 0.0
        %711 = vmatprep.subr.mxu0 0.0
        %712 = vmatpush1.msra.mxu0 0.0
        %713 = vmatprep.subr.mxu0 0.0
        %714 = vmatpush1.msra.mxu0 0.0
        %715 = vmatprep.subr.mxu0 0.0
        %716 = vmatpush1.msra.mxu0 0.0
        %717 = vmatprep.subr.mxu0 0.0
        %718 = vmatpush1.msra.mxu0 0.0
        %719 = vmatprep.subr.mxu0 0.0
        %720 = vmatpush1.msra.mxu0 0.0
        %721 = vmatprep.subr.mxu0 0.0
        %722 = vmatpush1.msra.mxu0 0.0
        %723 = vmatprep.subr.mxu0 0.0
        %724 = vmatpush1.msra.mxu0 0.0
        %725 = vmatprep.subr.mxu0 0.0
        %726 = vmatpush1.msra.mxu0 0.0
        %727 = vmatprep.subr.mxu0 0.0
        %728 = vmatpush1.msra.mxu0 0.0
        %729 = vmatprep.subr.mxu0 0.0
        %730 = vmatpush1.msra.mxu0 0.0
        %731 = vmatprep.subr.mxu0 0.0
        %732 = vmatpush1.msra.mxu0 0.0
        %733 = vmatprep.subr.mxu0 0.0
        %734 = vmatpush1.msra.mxu0 0.0
        %735 = vmatprep.subr.mxu0 0.0
        %736 = vmatpush1.msra.mxu0 0.0
        %737 = vmatprep.subr.mxu0 0.0
        %738 = vmatpush1.msra.mxu0 %v705
        %739 = vmatprep.subr.mxu0 0.0
        %740 = vmatpush2.msra.mxu0 0.0
        %741 = vmatprep.subr.mxu0 0.0
        %742 = vmatpush2.msra.mxu0 0.0
        %743 = vmatprep.subr.mxu0 0.0
        %744 = vmatpush2.msra.mxu0 0.0
        %745 = vmatprep.subr.mxu0 0.0
        %746 = vmatpush2.msra.mxu0 0.0
        %747 = vmatprep.subr.mxu0 0.0
        %748 = vmatpush2.msra.mxu0 0.0
        %749 = vmatprep.subr.mxu0 0.0
        %750 = vmatpush2.msra.mxu0 0.0
        %751 = vmatprep.subr.mxu0 0.0
        %752 = vmatpush2.msra.mxu0 0.0
        %753 = vmatprep.subr.mxu0 0.0
        %754 = vmatpush2.msra.mxu0 0.0
        %755 = vmatprep.subr.mxu0 0.0
        %756 = vmatpush2.msra.mxu0 0.0
        %757 = vmatprep.subr.mxu0 0.0
        %758 = vmatpush2.msra.mxu0 0.0
        %759 = vmatprep.subr.mxu0 0.0
        %760 = vmatpush2.msra.mxu0 0.0
        %761 = vmatprep.subr.mxu0 0.0
        %762 = vmatpush2.msra.mxu0 0.0
        %763 = vmatprep.subr.mxu0 0.0
        %764 = vmatpush2.msra.mxu0 0.0
        %765 = vmatprep.subr.mxu0 0.0
        %766 = vmatpush2.msra.mxu0 0.0
        %767 = vmatprep.subr.mxu0 0.0
        %768 = vmatpush2.msra.mxu0 0.0
        %769 = vmatprep.subr.mxu0 0.0
        %770 = vmatpush2.msra.mxu0 0.0
        %771 = vmatprep.mubr.f32.mxu0 0.0
        %772 = vmatmul.mubr.f32.gmra.mxu0 %v692
        %v773 = vpop.f32.mrf.mxu0
        %v774 = vadd.f32 0.0, %v773
        %v775 = vpop.f32.mrf.mxu0
        %776 = vmatprep.mubr.f32.mxu0 0.0
        %777 = vmatmul.mubr.f32.gmra.mxu0 %v695
        %v778 = vpop.f32.mrf.mxu0
        %v779 = vadd.f32 0.0, %v778
        %v780 = vpop.f32.mrf.mxu0
        %781 = vmatprep.mubr.f32.mxu0 0.0
        %782 = vmatmul.mubr.f32.gmra.mxu0 %v698
        %v783 = vpop.f32.mrf.mxu0
        %v784 = vadd.f32 0.0, %v783
        %v785 = vpop.f32.mrf.mxu0
        %786 = vmatprep.mubr.f32.mxu0 0.0
        %787 = vmatmul.mubr.f32.gmra.mxu0 %v701
        %v788 = vpop.f32.mrf.mxu0
        %v789 = vadd.f32 0.0, %v788
        %v790 = vpop.f32.mrf.mxu0
        %791 = vdwg.mxu0
        %vm792 = vcmask 48128
        %v794 = vsel %vm792, %v681, 0
        %v797 = vsel %vm792, %v682, 0
        %v800 = vsel %vm792, %v683, 0
        %v803 = vsel %vm792, %v684, 0
        %vm805 = vcmask 1045504
        %v807 = vsel %vm805, %v680, 0
        %809 = vmatprep.subr.mxu0 0.0
        %810 = vmatpush1.msra.mxu0 0.0
        %811 = vmatprep.subr.mxu0 0.0
        %812 = vmatpush1.msra.mxu0 0.0
        %813 = vmatprep.subr.mxu0 0.0
        %814 = vmatpush1.msra.mxu0 0.0
        %815 = vmatprep.subr.mxu0 0.0
        %816 = vmatpush1.msra.mxu0 0.0
        %817 = vmatprep.subr.mxu0 0.0
        %818 = vmatpush1.msra.mxu0 0.0
        %819 = vmatprep.subr.mxu0 0.0
        %820 = vmatpush1.msra.mxu0 0.0
        %821 = vmatprep.subr.mxu0 0.0
        %822 = vmatpush1.msra.mxu0 0.0
        %823 = vmatprep.subr.mxu0 0.0
        %824 = vmatpush1.msra.mxu0 0.0
        %825 = vmatprep.subr.mxu0 0.0
        %826 = vmatpush1.msra.mxu0 0.0
        %827 = vmatprep.subr.mxu0 0.0
        %828 = vmatpush1.msra.mxu0 0.0
        %829 = vmatprep.subr.mxu0 0.0
        %830 = vmatpush1.msra.mxu0 0.0
        %831 = vmatprep.subr.mxu0 0.0
        %832 = vmatpush1.msra.mxu0 0.0
        %833 = vmatprep.subr.mxu0 0.0
        %834 = vmatpush1.msra.mxu0 0.0
        %835 = vmatprep.subr.mxu0 0.0
        %836 = vmatpush1.msra.mxu0 0.0
        %837 = vmatprep.subr.mxu0 0.0
        %838 = vmatpush1.msra.mxu0 0.0
        %839 = vmatprep.subr.mxu0 0.0
        %840 = vmatpush1.msra.mxu0 %v807
        %841 = vmatprep.subr.mxu0 0.0
        %842 = vmatpush2.msra.mxu0 0.0
        %843 = vmatprep.subr.mxu0 0.0
        %844 = vmatpush2.msra.mxu0 0.0
        %845 = vmatprep.subr.mxu0 0.0
        %846 = vmatpush2.msra.mxu0 0.0
        %847 = vmatprep.subr.mxu0 0.0
        %848 = vmatpush2.msra.mxu0 0.0
        %849 = vmatprep.subr.mxu0 0.0
        %850 = vmatpush2.msra.mxu0 0.0
        %851 = vmatprep.subr.mxu0 0.0
        %852 = vmatpush2.msra.mxu0 0.0
        %853 = vmatprep.subr.mxu0 0.0
        %854 = vmatpush2.msra.mxu0 0.0
        %855 = vmatprep.subr.mxu0 0.0
        %856 = vmatpush2.msra.mxu0 0.0
        %857 = vmatprep.subr.mxu0 0.0
        %858 = vmatpush2.msra.mxu0 0.0
        %859 = vmatprep.subr.mxu0 0.0
        %860 = vmatpush2.msra.mxu0 0.0
        %861 = vmatprep.subr.mxu0 0.0
        %862 = vmatpush2.msra.mxu0 0.0
        %863 = vmatprep.subr.mxu0 0.0
        %864 = vmatpush2.msra.mxu0 0.0
        %865 = vmatprep.subr.mxu0 0.0
        %866 = vmatpush2.msra.mxu0 0.0
        %867 = vmatprep.subr.mxu0 0.0
        %868 = vmatpush2.msra.mxu0 0.0
        %869 = vmatprep.subr.mxu0 0.0
        %870 = vmatpush2.msra.mxu0 0.0
        %871 = vmatprep.subr.mxu0 0.0
        %872 = vmatpush2.msra.mxu0 0.0
        %873 = vmatprep.mubr.f32.mxu0 0.0
        %874 = vmatmul.mubr.f32.gmra.mxu0 %v794
        %v875 = vpop.f32.mrf.mxu0
        %v876 = vadd.f32 %v774, %v875
        %v877 = vpop.f32.mrf.mxu0
        %878 = vmatprep.mubr.f32.mxu0 0.0
        %879 = vmatmul.mubr.f32.gmra.mxu0 %v797
        %v880 = vpop.f32.mrf.mxu0
        %v881 = vadd.f32 %v779, %v880
        %v882 = vpop.f32.mrf.mxu0
        %883 = vmatprep.mubr.f32.mxu0 0.0
        %884 = vmatmul.mubr.f32.gmra.mxu0 %v800
        %v885 = vpop.f32.mrf.mxu0
        %v886 = vadd.f32 %v784, %v885
        %v887 = vpop.f32.mrf.mxu0
        %888 = vmatprep.mubr.f32.mxu0 0.0
        %889 = vmatmul.mubr.f32.gmra.mxu0 %v803
        %v890 = vpop.f32.mrf.mxu0
        %v891 = vadd.f32 %v789, %v890
        %v892 = vpop.f32.mrf.mxu0
        %893 = vdwg.mxu0
        %v894 = vld [vmem:[%s6] sm:$0xff]
        %v895 = vld [vmem:[%s6 + $0x8] sm:$0xff]
        %v896 = vld [vmem:[%s6 + $0x10] sm:$0xff]
        %v897 = vld [vmem:[%s6 + $0x18] sm:$0xff]
        %899 = vset.pattern.permute.xlu0 0
        %900 = vperm.xlu0 %899, %v894
        %v901 = vpop.permute.xlu0 %900
        %904 = vset.pattern.permute.xlu0 0
        %905 = vperm.xlu0 %904, %v895
        %v906 = vpop.permute.xlu0 %905
        %909 = vset.pattern.permute.xlu0 0
        %910 = vperm.xlu0 %909, %v896
        %v911 = vpop.permute.xlu0 %910
        %914 = vset.pattern.permute.xlu0 0
        %915 = vperm.xlu0 %914, %v897
        %v916 = vpop.permute.xlu0 %915
        %v918 = vadd.f32 %v876, %v901
        %v919 = vadd.f32 %v881, %v906
        %v920 = vadd.f32 %v886, %v911
        %v921 = vadd.f32 %v891, %v916
        %v922 = vmax.f32 %v918, 0.0
        %v923 = vmax.f32 %v919, 0.0
        %v924 = vmax.f32 %v920, 0.0
        %v925 = vmax.f32 %v921, 0.0
        %v926 = vld [vmem:[%s7] sm:$0xff]
        %v927 = vld [vmem:[%s7 + $0x8] sm:$0xff]
        %v928 = vld [vmem:[%s8] sm:$0xff]
        %v929 = vld [vmem:[%s8 + $0x8] sm:$0xff]
        %931 = vset.pattern.permute.xlu0 0
        %932 = vperm.xlu0 %931, %v928
        %v933 = vpop.permute.xlu0 %932
        %936 = vset.pattern.permute.xlu0 0
        %937 = vperm.xlu0 %936, %v929
        %v938 = vpop.permute.xlu0 %937
        %vm940 = vcmask 261120
        %v942 = vsel %vm940, %v926, 0
        %v945 = vsel %vm940, %v927, 0
        %947 = vmatprep.subr.mxu0 0.0
        %948 = vmatpush1.msra.mxu0 0.0
        %949 = vmatprep.subr.mxu0 0.0
        %950 = vmatpush1.msra.mxu0 0.0
        %951 = vmatprep.subr.mxu0 0.0
        %952 = vmatpush1.msra.mxu0 0.0
        %953 = vmatprep.subr.mxu0 0.0
        %954 = vmatpush1.msra.mxu0 0.0
        %955 = vmatprep.subr.mxu0 0.0
        %956 = vmatpush1.msra.mxu0 0.0
        %957 = vmatprep.subr.mxu0 0.0
        %958 = vmatpush1.msra.mxu0 0.0
        %959 = vmatprep.subr.mxu0 0.0
        %960 = vmatpush1.msra.mxu0 0.0
        %961 = vmatprep.subr.mxu0 0.0
        %962 = vmatpush1.msra.mxu0 0.0
        %963 = vmatprep.subr.mxu0 0.0
        %964 = vmatpush1.msra.mxu0 0.0
        %965 = vmatprep.subr.mxu0 0.0
        %966 = vmatpush1.msra.mxu0 0.0
        %967 = vmatprep.subr.mxu0 0.0
        %968 = vmatpush1.msra.mxu0 0.0
        %969 = vmatprep.subr.mxu0 0.0
        %970 = vmatpush1.msra.mxu0 0.0
        %971 = vmatprep.subr.mxu0 0.0
        %972 = vmatpush1.msra.mxu0 %v925
        %973 = vmatprep.subr.mxu0 0.0
        %974 = vmatpush1.msra.mxu0 %v924
        %975 = vmatprep.subr.mxu0 0.0
        %976 = vmatpush1.msra.mxu0 %v923
        %977 = vmatprep.subr.mxu0 0.0
        %978 = vmatpush1.msra.mxu0 %v922
        %979 = vmatprep.subr.mxu0 0.0
        %980 = vmatpush2.msra.mxu0 0.0
        %981 = vmatprep.subr.mxu0 0.0
        %982 = vmatpush2.msra.mxu0 0.0
        %983 = vmatprep.subr.mxu0 0.0
        %984 = vmatpush2.msra.mxu0 0.0
        %985 = vmatprep.subr.mxu0 0.0
        %986 = vmatpush2.msra.mxu0 0.0
        %987 = vmatprep.subr.mxu0 0.0
        %988 = vmatpush2.msra.mxu0 0.0
        %989 = vmatprep.subr.mxu0 0.0
        %990 = vmatpush2.msra.mxu0 0.0
        %991 = vmatprep.subr.mxu0 0.0
        %992 = vmatpush2.msra.mxu0 0.0
        %993 = vmatprep.subr.mxu0 0.0
        %994 = vmatpush2.msra.mxu0 0.0
        %995 = vmatprep.subr.mxu0 0.0
        %996 = vmatpush2.msra.mxu0 0.0
        %997 = vmatprep.subr.mxu0 0.0
        %998 = vmatpush2.msra.mxu0 0.0
        %999 = vmatprep.subr.mxu0 0.0
        %1000 = vmatpush2.msra.mxu0 0.0
        %1001 = vmatprep.subr.mxu0 0.0
        %1002 = vmatpush2.msra.mxu0 0.0
        %1003 = vmatprep.subr.mxu0 0.0
        %1004 = vmatpush2.msra.mxu0 0.0
        %1005 = vmatprep.subr.mxu0 0.0
        %1006 = vmatpush2.msra.mxu0 0.0
        %1007 = vmatprep.subr.mxu0 0.0
        %1008 = vmatpush2.msra.mxu0 0.0
        %1009 = vmatprep.subr.mxu0 0.0
        %1010 = vmatpush2.msra.mxu0 0.0
        %1011 = vmatprep.mubr.f32.mxu0 0.0
        %1012 = vmatmul.mubr.f32.gmra.mxu0 %v942
        %v1013 = vpop.f32.mrf.mxu0
        %v1014 = vadd.f32 %v933, %v1013
        %v1015 = vpop.f32.mrf.mxu0
        %1016 = vmatprep.mubr.f32.mxu0 0.0
        %1017 = vmatmul.mubr.f32.gmra.mxu0 %v945
        %v1018 = vpop.f32.mrf.mxu0
        %v1019 = vadd.f32 %v938, %v1018
        %v1020 = vpop.f32.mrf.mxu0
        %1021 = vdwg.mxu0
        %v1022 = vmax.f32 %v1014, 0.0
        %v1023 = vmax.f32 %v1019, 0.0
        %1024 = vst.msk [vmem:[%s392] sm:$0xff] %vm514, %v1022
        %1025 = vst.msk [vmem:[%s392 + $0x8] sm:$0xff] %vm514, %v1023
        %s1026 = sand.u32 %s258, 1
        %s1027 = scalar_lea.sflag [#allocation3], %s1026
        %s1028 = sand.u32 %s258, 1
        %s1029 = smul.addr %s1028, 16
        %s1030 = scalar_lea.vmem [#allocation2], %s1029
        // Predicated region
        $region57: #{tpu_custom_call.1} parent=55 // pred_check
          %p1031 = pneg %p268
        $region58: #{tpu_custom_call.1} parent=55 // pred_check_branch
          %1033 = sbr.rel (%p1031) target = $region60
        $region59: #{tpu_custom_call.1} parent=55 // pred_region
          %s1035 = ssub.s32 256, 256
          %1036 = vsyncadd %s1027, %s1035
          %s1037 = smul.addr %s27, 2
          %s1038 = sadd.s32 %s28, %s1037
          %s1039 = smul.addr %s1038, 128
          %s1040 = scalar_lea.hbm %s9, %s1039
          %s1041 = sshll.u32 %s1030, 4
          %s1042 = int_to_ptr.vmem [resolvable:$true] %s1041
          %1047 = dma.vmem_to_hbm [thread:$0]  %s1042, 256, %s1040, %s1027, 128, 128, 8
        $region60: #{tpu_custom_call.1} parent=55 // pred_fallthru
          _
      $region56: #{tpu_custom_call.1} parent=5 // pred_fallthru
        _
      %p1048 = scmp.le.s32.totalorder 2, %s18
      // Predicated region
      $region61: #{tpu_custom_call.1} parent=5 // pred_check
        %p1049 = pneg %p1048
      $region62: #{tpu_custom_call.1} parent=5 // pred_check_branch
        %1051 = sbr.rel (%p1049) target = $region64
      $region63: #{tpu_custom_call.1} parent=5 // pred_region
        %s1052 = ssub.s32 %s18, 2
        // Predicated region
        $region65: #{tpu_custom_call.1} parent=63 // pred_check
          %p1053 = pneg %p274
        $region66: #{tpu_custom_call.1} parent=63 // pred_check_branch
          %1055 = sbr.rel (%p1053) target = $region68
        $region67: #{tpu_custom_call.1} parent=63 // pred_region
          %s1056 = sand.u32 %s259, 1
          %s1057 = scalar_lea.sflag [#allocation3], %s1056
          %s1058 = sand.u32 %s259, 1
          %s1059 = smul.addr %s1058, 16
          %s1060 = scalar_lea.vmem [#allocation2], %s1059
          %1061 = dma.done %s1057, 256
        $region68: #{tpu_custom_call.1} parent=63 // pred_fallthru
          _
      $region64: #{tpu_custom_call.1} parent=5 // pred_fallthru
        _
    $region6: #{tpu_custom_call.1} parent=1 // loop_footer
      %s22 = sadd.s32 1, %s18
    $region7: #{tpu_custom_call.1} parent=1 // loop_footer_branch
      %17 = sbr.rel target = $region3
    $region8: #{tpu_custom_call.1} parent=1 // loop_exit
      _
    %1062 = vsyncpa [#allocation3], 1
    %s1063 = scalar_lea.sflag [#allocation3], 1
    %1064 = vsyncpa %s1063, 1

</llo_original>
